<compile_context>
chip_gen: v7x
topology: tpu7x:2x2x1
jax: 0.10.0
libtpu: 0.0.40
codegen_flags: <defaults>
</compile_context>

<pallas_src>
import functools

import jax
import jax.numpy as jnp
from jax.experimental import pallas as pl
from jax.experimental.pallas import tpu as pltpu

_LANES = 128
_ROW_GRAIN = 16            # sublane granularity good for both f32 (8) and bf16 (16)


def _cdiv(a, b):
    return -(-a // b)


def _round_up(a, b):
    return _cdiv(a, b) * b


def _relu6(v):
    return jnp.minimum(jnp.maximum(v, 0.0), 6.0)


def _relu(v):
    return jnp.maximum(v, 0.0)


def mlp_unroll_kernel(w_ref, x_ref, out_ref):
    # w_ref  : SMEM (36,) f32        -- w1 (6x3 row-major) then w2 (6x3 row-major)
    # x_ref  : VMEM (6, TR, 128)     -- rows 0-2 = x1 features, 3-5 = x2 features
    # out_ref: VMEM (2, TR, 128) f32 -- row 0 = l1, row 1 = l2

    # Read every weight scalar exactly once so its vreg splat is hoisted once
    # per tile instead of being re-materialized per stage.
    w = [w_ref[i] for i in range(36)]

    def w1(k, j):
        return w[k * 3 + j]

    def w2(k, j):
        return w[18 + k * 3 + j]

    # Load the six feature planes once.  The astype is a no-op for f32 slabs;
    # for bf16 slabs it upcasts once so the whole stage chain stays f32.
    x10 = x_ref[0].astype(jnp.float32)
    x11 = x_ref[1].astype(jnp.float32)
    x12 = x_ref[2].astype(jnp.float32)
    x20 = x_ref[3].astype(jnp.float32)
    x21 = x_ref[4].astype(jnp.float32)
    x22 = x_ref[5].astype(jnp.float32)

    # Stage 0: l_out == [1, 1, 1] (peepholed: plain dot with the raw inputs).
    l1 = _relu6(w1(0, 0) * x10 + w1(0, 1) * x11 + w1(0, 2) * x12)
    l2 = _relu6(w2(0, 0) * x20 + w2(0, 1) * x21 + w2(0, 2) * x22)

    # Stages 1..5: Linear(3->1) on x * [l1, l2, 1]
    #   = w[k,0]*x[:,0]*l1 + w[k,1]*x[:,1]*l2 + w[k,2]*x[:,2]
    acts = (_relu6, _relu, _relu, _relu, None)
    for idx, act in enumerate(acts):
        k = idx + 1
        s1 = w1(k, 0) * x10 * l1 + w1(k, 1) * x11 * l2 + w1(k, 2) * x12
        s2 = w2(k, 0) * x20 * l1 + w2(k, 1) * x21 * l2 + w2(k, 2) * x22
        l1 = s1 if act is None else act(s1)
        l2 = s2 if act is None else act(s2)

    out_ref[0] = l1
    out_ref[1] = l2


def _pick_tile_rows(rows, tr_max, target_tiles):
    """Tile rows: ~target_tiles grid steps, multiple of _ROW_GRAIN, <= tr_max."""
    tr = _round_up(_cdiv(rows, target_tiles), _ROW_GRAIN)
    return min(tr_max, max(_ROW_GRAIN, tr))


def mlp_pregression_slab(xs, w, *, tr=None, tr_max=1024, target_tiles=8):
    """Primary (zero-copy) entry point.

    xs: (6, R, 128) feature-major input slab, R a multiple of 16
        (rows 0-2 = x1 features, rows 3-5 = x2 features, batch on lanes).
    w : (36,) f32 = w1.ravel() ++ w2.ravel() of the 12 Linear(3,1) layers.
    Returns a (2, R, 128) f32 slab: row 0 = l1, row 1 = l2.
    """
    six, R, lanes = xs.shape
    assert six == 6 and lanes == _LANES and R % _ROW_GRAIN == 0, xs.shape

    if tr is None:
        tr = _pick_tile_rows(R, tr_max, target_tiles)
        while R % tr != 0:          # terminates at _ROW_GRAIN at worst
            tr -= _ROW_GRAIN
    assert R % tr == 0 and tr % _ROW_GRAIN == 0, (R, tr)

    return pl.pallas_call(
        mlp_unroll_kernel,
        out_shape=jax.ShapeDtypeStruct((2, R, _LANES), jnp.float32),
        grid=(R // tr,),
        in_specs=[
            pl.BlockSpec(memory_space=pltpu.MemorySpace.SMEM),      # weights
            pl.BlockSpec((6, tr, _LANES), lambda i: (0, i, 0)),     # x slab
        ],
        out_specs=pl.BlockSpec((2, tr, _LANES), lambda i: (0, i, 0)),
        compiler_params=pltpu.CompilerParams(
            # TODO(synk): confirm "parallel" shards the batch grid across both
            # TensorCores on v7x; otherwise switch to pltpu.CORE_PARALLEL.
            dimension_semantics=("parallel",),
            vmem_limit_bytes=32 * 1024 * 1024,
        ),
    )(w, xs)


@functools.partial(jax.jit,
                   static_argnames=("tr_max", "target_tiles", "input_dtype"))
def mlp_pregression(x1, x2, w1, w2, *, tr_max=1024, target_tiles=8,
                    input_dtype=jnp.float32):
    """Convenience entry point matching MLPPregression.forward(x1, x2).

    x1, x2: (B, 3).  w1, w2: (6, 3) stacked Linear weights.  Returns (B, 2) f32.
    Jitted end-to-end so the layout change (transpose/concat/pad/reshape) fuses
    into a single pass writing the slab once; callers that can produce the slab
    directly should use mlp_pregression_slab instead.
    """
    B = x1.shape[0]
    r_needed = _cdiv(B, _LANES)
    tr = _pick_tile_rows(r_needed, tr_max, target_tiles)
    r_total = _round_up(r_needed, tr)          # exact multiple of tr
    b_pad = r_total * _LANES

    # Feature-major stack: (6, B) = [x1_f0, x1_f1, x1_f2, x2_f0, x2_f1, x2_f2]
    xs = jnp.concatenate([x1.astype(jnp.float32).T,
                          x2.astype(jnp.float32).T], axis=0).astype(input_dtype)
    if b_pad != B:
        xs = jnp.pad(xs, ((0, 0), (0, b_pad - B)))
    xs = xs.reshape(6, r_total, _LANES)

    w = jnp.concatenate([w1.reshape(-1), w2.reshape(-1)]).astype(jnp.float32)

    out = mlp_pregression_slab(xs, w, tr=tr)
    # Lane-dense (2, R, 128) -> (B, 2): cheap layout plumbing, fused under jit.
    return out.reshape(2, b_pad)[:, :B].T


def mlp_pregression_ref(x1, x2, w1, w2):
    """Pure-JAX reference mirroring the PyTorch forward exactly."""
    B = x1.shape[0]
    ones = jnp.ones((B, 1), jnp.float32)

    def lin(x, wrow):                      # nn.Linear(3, 1, bias=False)
        return x @ wrow[:, None]

    l1 = _relu6(lin(x1, w1[0])); l2 = _relu6(lin(x2, w2[0]))
    l_out = jnp.concatenate([l1, l2, ones], axis=1)
    l1 = _relu6(lin(x1 * l_out, w1[1])); l2 = _relu6(lin(x2 * l_out, w2[1]))
    l_out = jnp.concatenate([l1, l2, ones], axis=1)
    for k in (2, 3, 4):
        l1 = _relu(lin(x1 * l_out, w1[k])); l2 = _relu(lin(x2 * l_out, w2[k]))
        l_out = jnp.concatenate([l1, l2, ones], axis=1)
    l1 = lin(x1 * l_out, w1[5]); l2 = lin(x2 * l_out, w2[5])
    return jnp.concatenate([l1, l2], axis=1)


if __name__ == "__main__":
    key = jax.random.PRNGKey(0)
    k_x1, k_x2, k_w1, k_w2, k_y1, k_y2 = jax.random.split(key, 6)

    # nn.Linear default init: U(-1/sqrt(in_features), 1/sqrt(in_features)).
    bound = 1.0 / jnp.sqrt(3.0)
    w1 = jax.random.uniform(k_w1, (6, 3), jnp.float32, -bound, bound)
    w2 = jax.random.uniform(k_w2, (6, 3), jnp.float32, -bound, bound)

    # Small batch (exercises pad-to-128 and the single-tile path).
    B = 8
    x1 = jax.random.normal(k_x1, (B, 3), dtype=jnp.float32)
    x2 = jax.random.normal(k_x2, (B, 3), dtype=jnp.float32)
    out = jax.block_until_ready(mlp_pregression(x1, x2, w1, w2))
    ref = mlp_pregression_ref(x1, x2, w1, w2)
    assert out.shape == (B, 2), out.shape
    assert jnp.allclose(out, ref, atol=1e-5, rtol=1e-5), (out, ref)

    # Larger, non-aligned batch: default heuristics now give a multi-step grid
    # (double-buffered pipeline + "parallel" batch axis for v7x megacore).
    B2 = 2053
    y1 = jax.random.normal(k_y1, (B2, 3), dtype=jnp.float32)
    y2 = jax.random.normal(k_y2, (B2, 3), dtype=jnp.float32)
    out2 = jax.block_until_ready(mlp_pregression(y1, y2, w1, w2))
    ref2 = mlp_pregression_ref(y1, y2, w1, w2)
    assert out2.shape == (B2, 2), out2.shape
    assert jnp.allclose(out2, ref2, atol=1e-5, rtol=1e-5)

    # Optional bf16-input path (half the input HBM traffic; math stays f32).
    # Compare against the f32 reference fed with bf16-rounded inputs, which is
    # exactly what the kernel computes.
    out3 = jax.block_until_ready(
        mlp_pregression(y1, y2, w1, w2, input_dtype=jnp.bfloat16))
    y1_r = y1.astype(jnp.bfloat16).astype(jnp.float32)
    y2_r = y2.astype(jnp.bfloat16).astype(jnp.float32)
    ref3 = mlp_pregression_ref(y1_r, y2_r, w1, w2)
    assert out3.shape == (B2, 2), out3.shape
    assert jnp.allclose(out3, ref3, atol=1e-4, rtol=1e-4)

    print("KERNEL_OK")
</pallas_src>

<mosaic_0001>
module attributes {stable_mosaic.version = 11 : i64} {
  func.func @mlp_unroll_kernel(%arg0: i32, %arg1: memref<36xf32, #tpu.memory_space<smem>>, %arg2: memref<6x16x128xf32, #tpu.memory_space<vmem>>, %arg3: memref<2x16x128xf32, #tpu.memory_space<vmem>>) attributes {dimension_semantics = [#tpu.dimension_semantics<parallel>], iteration_bounds = array<i64: 1>, scalar_prefetch = 0 : i64, scratch_operands = 0 : i64, tpu.core_type = #tpu.core_type<tc>, window_params = [{transform_indices = @transform_0, window_bounds = array<i64: 36>}, {transform_indices = @transform_1, window_bounds = array<i64: 6, 16, 128>}, {transform_indices = @transform_2, window_bounds = array<i64: 2, 16, 128>}]} {
    %c0 = arith.constant 0 : index
    %0 = memref.load %arg1[%c0] : memref<36xf32, #tpu.memory_space<smem>>
    %c1 = arith.constant 1 : index
    %1 = memref.load %arg1[%c1] : memref<36xf32, #tpu.memory_space<smem>>
    %c2 = arith.constant 2 : index
    %2 = memref.load %arg1[%c2] : memref<36xf32, #tpu.memory_space<smem>>
    %c3 = arith.constant 3 : index
    %3 = memref.load %arg1[%c3] : memref<36xf32, #tpu.memory_space<smem>>
    %c4 = arith.constant 4 : index
    %4 = memref.load %arg1[%c4] : memref<36xf32, #tpu.memory_space<smem>>
    %c5 = arith.constant 5 : index
    %5 = memref.load %arg1[%c5] : memref<36xf32, #tpu.memory_space<smem>>
    %c6 = arith.constant 6 : index
    %6 = memref.load %arg1[%c6] : memref<36xf32, #tpu.memory_space<smem>>
    %c7 = arith.constant 7 : index
    %7 = memref.load %arg1[%c7] : memref<36xf32, #tpu.memory_space<smem>>
    %c8 = arith.constant 8 : index
    %8 = memref.load %arg1[%c8] : memref<36xf32, #tpu.memory_space<smem>>
    %c9 = arith.constant 9 : index
    %9 = memref.load %arg1[%c9] : memref<36xf32, #tpu.memory_space<smem>>
    %c10 = arith.constant 10 : index
    %10 = memref.load %arg1[%c10] : memref<36xf32, #tpu.memory_space<smem>>
    %c11 = arith.constant 11 : index
    %11 = memref.load %arg1[%c11] : memref<36xf32, #tpu.memory_space<smem>>
    %c12 = arith.constant 12 : index
    %12 = memref.load %arg1[%c12] : memref<36xf32, #tpu.memory_space<smem>>
    %c13 = arith.constant 13 : index
    %13 = memref.load %arg1[%c13] : memref<36xf32, #tpu.memory_space<smem>>
    %c14 = arith.constant 14 : index
    %14 = memref.load %arg1[%c14] : memref<36xf32, #tpu.memory_space<smem>>
    %c15 = arith.constant 15 : index
    %15 = memref.load %arg1[%c15] : memref<36xf32, #tpu.memory_space<smem>>
    %c16 = arith.constant 16 : index
    %16 = memref.load %arg1[%c16] : memref<36xf32, #tpu.memory_space<smem>>
    %c17 = arith.constant 17 : index
    %17 = memref.load %arg1[%c17] : memref<36xf32, #tpu.memory_space<smem>>
    %c18 = arith.constant 18 : index
    %18 = memref.load %arg1[%c18] : memref<36xf32, #tpu.memory_space<smem>>
    %c19 = arith.constant 19 : index
    %19 = memref.load %arg1[%c19] : memref<36xf32, #tpu.memory_space<smem>>
    %c20 = arith.constant 20 : index
    %20 = memref.load %arg1[%c20] : memref<36xf32, #tpu.memory_space<smem>>
    %c21 = arith.constant 21 : index
    %21 = memref.load %arg1[%c21] : memref<36xf32, #tpu.memory_space<smem>>
    %c22 = arith.constant 22 : index
    %22 = memref.load %arg1[%c22] : memref<36xf32, #tpu.memory_space<smem>>
    %c23 = arith.constant 23 : index
    %23 = memref.load %arg1[%c23] : memref<36xf32, #tpu.memory_space<smem>>
    %c24 = arith.constant 24 : index
    %24 = memref.load %arg1[%c24] : memref<36xf32, #tpu.memory_space<smem>>
    %c25 = arith.constant 25 : index
    %25 = memref.load %arg1[%c25] : memref<36xf32, #tpu.memory_space<smem>>
    %c26 = arith.constant 26 : index
    %26 = memref.load %arg1[%c26] : memref<36xf32, #tpu.memory_space<smem>>
    %c27 = arith.constant 27 : index
    %27 = memref.load %arg1[%c27] : memref<36xf32, #tpu.memory_space<smem>>
    %c28 = arith.constant 28 : index
    %28 = memref.load %arg1[%c28] : memref<36xf32, #tpu.memory_space<smem>>
    %c29 = arith.constant 29 : index
    %29 = memref.load %arg1[%c29] : memref<36xf32, #tpu.memory_space<smem>>
    %c30 = arith.constant 30 : index
    %30 = memref.load %arg1[%c30] : memref<36xf32, #tpu.memory_space<smem>>
    %c31 = arith.constant 31 : index
    %31 = memref.load %arg1[%c31] : memref<36xf32, #tpu.memory_space<smem>>
    %c32 = arith.constant 32 : index
    %32 = memref.load %arg1[%c32] : memref<36xf32, #tpu.memory_space<smem>>
    %c33 = arith.constant 33 : index
    %33 = memref.load %arg1[%c33] : memref<36xf32, #tpu.memory_space<smem>>
    %c34 = arith.constant 34 : index
    %34 = memref.load %arg1[%c34] : memref<36xf32, #tpu.memory_space<smem>>
    %c35 = arith.constant 35 : index
    %35 = memref.load %arg1[%c35] : memref<36xf32, #tpu.memory_space<smem>>
    %c0_0 = arith.constant 0 : index
    %c0_1 = arith.constant 0 : index
    %c0_2 = arith.constant 0 : index
    %36 = vector.load %arg2[%c0_0, %c0_1, %c0_2] : memref<6x16x128xf32, #tpu.memory_space<vmem>>, vector<1x16x128xf32>
    %37 = vector.shape_cast %36 : vector<1x16x128xf32> to vector<16x128xf32>
    %c1_3 = arith.constant 1 : index
    %c0_4 = arith.constant 0 : index
    %c0_5 = arith.constant 0 : index
    %38 = vector.load %arg2[%c1_3, %c0_4, %c0_5] : memref<6x16x128xf32, #tpu.memory_space<vmem>>, vector<1x16x128xf32>
    %39 = vector.shape_cast %38 : vector<1x16x128xf32> to vector<16x128xf32>
    %c2_6 = arith.constant 2 : index
    %c0_7 = arith.constant 0 : index
    %c0_8 = arith.constant 0 : index
    %40 = vector.load %arg2[%c2_6, %c0_7, %c0_8] : memref<6x16x128xf32, #tpu.memory_space<vmem>>, vector<1x16x128xf32>
    %41 = vector.shape_cast %40 : vector<1x16x128xf32> to vector<16x128xf32>
    %c3_9 = arith.constant 3 : index
    %c0_10 = arith.constant 0 : index
    %c0_11 = arith.constant 0 : index
    %42 = vector.load %arg2[%c3_9, %c0_10, %c0_11] : memref<6x16x128xf32, #tpu.memory_space<vmem>>, vector<1x16x128xf32>
    %43 = vector.shape_cast %42 : vector<1x16x128xf32> to vector<16x128xf32>
    %c4_12 = arith.constant 4 : index
    %c0_13 = arith.constant 0 : index
    %c0_14 = arith.constant 0 : index
    %44 = vector.load %arg2[%c4_12, %c0_13, %c0_14] : memref<6x16x128xf32, #tpu.memory_space<vmem>>, vector<1x16x128xf32>
    %45 = vector.shape_cast %44 : vector<1x16x128xf32> to vector<16x128xf32>
    %c5_15 = arith.constant 5 : index
    %c0_16 = arith.constant 0 : index
    %c0_17 = arith.constant 0 : index
    %46 = vector.load %arg2[%c5_15, %c0_16, %c0_17] : memref<6x16x128xf32, #tpu.memory_space<vmem>>, vector<1x16x128xf32>
    %47 = vector.shape_cast %46 : vector<1x16x128xf32> to vector<16x128xf32>
    %48 = vector.broadcast %0 : f32 to vector<16x128xf32>
    %49 = arith.mulf %48, %37 : vector<16x128xf32>
    %50 = vector.broadcast %1 : f32 to vector<16x128xf32>
    %51 = arith.mulf %50, %39 : vector<16x128xf32>
    %52 = arith.addf %49, %51 : vector<16x128xf32>
    %53 = vector.broadcast %2 : f32 to vector<16x128xf32>
    %54 = arith.mulf %53, %41 : vector<16x128xf32>
    %55 = arith.addf %52, %54 : vector<16x128xf32>
    %cst = arith.constant 0.000000e+00 : f32
    %56 = vector.broadcast %cst : f32 to vector<16x128xf32>
    %57 = arith.maximumf %55, %56 : vector<16x128xf32>
    %cst_18 = arith.constant 6.000000e+00 : f32
    %58 = vector.broadcast %cst_18 : f32 to vector<16x128xf32>
    %59 = arith.minimumf %57, %58 : vector<16x128xf32>
    %60 = vector.broadcast %18 : f32 to vector<16x128xf32>
    %61 = arith.mulf %60, %43 : vector<16x128xf32>
    %62 = vector.broadcast %19 : f32 to vector<16x128xf32>
    %63 = arith.mulf %62, %45 : vector<16x128xf32>
    %64 = arith.addf %61, %63 : vector<16x128xf32>
    %65 = vector.broadcast %20 : f32 to vector<16x128xf32>
    %66 = arith.mulf %65, %47 : vector<16x128xf32>
    %67 = arith.addf %64, %66 : vector<16x128xf32>
    %cst_19 = arith.constant 0.000000e+00 : f32
    %68 = vector.broadcast %cst_19 : f32 to vector<16x128xf32>
    %69 = arith.maximumf %67, %68 : vector<16x128xf32>
    %cst_20 = arith.constant 6.000000e+00 : f32
    %70 = vector.broadcast %cst_20 : f32 to vector<16x128xf32>
    %71 = arith.minimumf %69, %70 : vector<16x128xf32>
    %72 = vector.broadcast %3 : f32 to vector<16x128xf32>
    %73 = arith.mulf %72, %37 : vector<16x128xf32>
    %74 = arith.mulf %73, %59 : vector<16x128xf32>
    %75 = vector.broadcast %4 : f32 to vector<16x128xf32>
    %76 = arith.mulf %75, %39 : vector<16x128xf32>
    %77 = arith.mulf %76, %71 : vector<16x128xf32>
    %78 = arith.addf %74, %77 : vector<16x128xf32>
    %79 = vector.broadcast %5 : f32 to vector<16x128xf32>
    %80 = arith.mulf %79, %41 : vector<16x128xf32>
    %81 = arith.addf %78, %80 : vector<16x128xf32>
    %82 = vector.broadcast %21 : f32 to vector<16x128xf32>
    %83 = arith.mulf %82, %43 : vector<16x128xf32>
    %84 = arith.mulf %83, %59 : vector<16x128xf32>
    %85 = vector.broadcast %22 : f32 to vector<16x128xf32>
    %86 = arith.mulf %85, %45 : vector<16x128xf32>
    %87 = arith.mulf %86, %71 : vector<16x128xf32>
    %88 = arith.addf %84, %87 : vector<16x128xf32>
    %89 = vector.broadcast %23 : f32 to vector<16x128xf32>
    %90 = arith.mulf %89, %47 : vector<16x128xf32>
    %91 = arith.addf %88, %90 : vector<16x128xf32>
    %cst_21 = arith.constant 0.000000e+00 : f32
    %92 = vector.broadcast %cst_21 : f32 to vector<16x128xf32>
    %93 = arith.maximumf %81, %92 : vector<16x128xf32>
    %cst_22 = arith.constant 6.000000e+00 : f32
    %94 = vector.broadcast %cst_22 : f32 to vector<16x128xf32>
    %95 = arith.minimumf %93, %94 : vector<16x128xf32>
    %cst_23 = arith.constant 0.000000e+00 : f32
    %96 = vector.broadcast %cst_23 : f32 to vector<16x128xf32>
    %97 = arith.maximumf %91, %96 : vector<16x128xf32>
    %cst_24 = arith.constant 6.000000e+00 : f32
    %98 = vector.broadcast %cst_24 : f32 to vector<16x128xf32>
    %99 = arith.minimumf %97, %98 : vector<16x128xf32>
    %100 = vector.broadcast %6 : f32 to vector<16x128xf32>
    %101 = arith.mulf %100, %37 : vector<16x128xf32>
    %102 = arith.mulf %101, %95 : vector<16x128xf32>
    %103 = vector.broadcast %7 : f32 to vector<16x128xf32>
    %104 = arith.mulf %103, %39 : vector<16x128xf32>
    %105 = arith.mulf %104, %99 : vector<16x128xf32>
    %106 = arith.addf %102, %105 : vector<16x128xf32>
    %107 = vector.broadcast %8 : f32 to vector<16x128xf32>
    %108 = arith.mulf %107, %41 : vector<16x128xf32>
    %109 = arith.addf %106, %108 : vector<16x128xf32>
    %110 = vector.broadcast %24 : f32 to vector<16x128xf32>
    %111 = arith.mulf %110, %43 : vector<16x128xf32>
    %112 = arith.mulf %111, %95 : vector<16x128xf32>
    %113 = vector.broadcast %25 : f32 to vector<16x128xf32>
    %114 = arith.mulf %113, %45 : vector<16x128xf32>
    %115 = arith.mulf %114, %99 : vector<16x128xf32>
    %116 = arith.addf %112, %115 : vector<16x128xf32>
    %117 = vector.broadcast %26 : f32 to vector<16x128xf32>
    %118 = arith.mulf %117, %47 : vector<16x128xf32>
    %119 = arith.addf %116, %118 : vector<16x128xf32>
    %cst_25 = arith.constant 0.000000e+00 : f32
    %120 = vector.broadcast %cst_25 : f32 to vector<16x128xf32>
    %121 = arith.maximumf %109, %120 : vector<16x128xf32>
    %cst_26 = arith.constant 0.000000e+00 : f32
    %122 = vector.broadcast %cst_26 : f32 to vector<16x128xf32>
    %123 = arith.maximumf %119, %122 : vector<16x128xf32>
    %124 = vector.broadcast %9 : f32 to vector<16x128xf32>
    %125 = arith.mulf %124, %37 : vector<16x128xf32>
    %126 = arith.mulf %125, %121 : vector<16x128xf32>
    %127 = vector.broadcast %10 : f32 to vector<16x128xf32>
    %128 = arith.mulf %127, %39 : vector<16x128xf32>
    %129 = arith.mulf %128, %123 : vector<16x128xf32>
    %130 = arith.addf %126, %129 : vector<16x128xf32>
    %131 = vector.broadcast %11 : f32 to vector<16x128xf32>
    %132 = arith.mulf %131, %41 : vector<16x128xf32>
    %133 = arith.addf %130, %132 : vector<16x128xf32>
    %134 = vector.broadcast %27 : f32 to vector<16x128xf32>
    %135 = arith.mulf %134, %43 : vector<16x128xf32>
    %136 = arith.mulf %135, %121 : vector<16x128xf32>
    %137 = vector.broadcast %28 : f32 to vector<16x128xf32>
    %138 = arith.mulf %137, %45 : vector<16x128xf32>
    %139 = arith.mulf %138, %123 : vector<16x128xf32>
    %140 = arith.addf %136, %139 : vector<16x128xf32>
    %141 = vector.broadcast %29 : f32 to vector<16x128xf32>
    %142 = arith.mulf %141, %47 : vector<16x128xf32>
    %143 = arith.addf %140, %142 : vector<16x128xf32>
    %cst_27 = arith.constant 0.000000e+00 : f32
    %144 = vector.broadcast %cst_27 : f32 to vector<16x128xf32>
    %145 = arith.maximumf %133, %144 : vector<16x128xf32>
    %cst_28 = arith.constant 0.000000e+00 : f32
    %146 = vector.broadcast %cst_28 : f32 to vector<16x128xf32>
    %147 = arith.maximumf %143, %146 : vector<16x128xf32>
    %148 = vector.broadcast %12 : f32 to vector<16x128xf32>
    %149 = arith.mulf %148, %37 : vector<16x128xf32>
    %150 = arith.mulf %149, %145 : vector<16x128xf32>
    %151 = vector.broadcast %13 : f32 to vector<16x128xf32>
    %152 = arith.mulf %151, %39 : vector<16x128xf32>
    %153 = arith.mulf %152, %147 : vector<16x128xf32>
    %154 = arith.addf %150, %153 : vector<16x128xf32>
    %155 = vector.broadcast %14 : f32 to vector<16x128xf32>
    %156 = arith.mulf %155, %41 : vector<16x128xf32>
    %157 = arith.addf %154, %156 : vector<16x128xf32>
    %158 = vector.broadcast %30 : f32 to vector<16x128xf32>
    %159 = arith.mulf %158, %43 : vector<16x128xf32>
    %160 = arith.mulf %159, %145 : vector<16x128xf32>
    %161 = vector.broadcast %31 : f32 to vector<16x128xf32>
    %162 = arith.mulf %161, %45 : vector<16x128xf32>
    %163 = arith.mulf %162, %147 : vector<16x128xf32>
    %164 = arith.addf %160, %163 : vector<16x128xf32>
    %165 = vector.broadcast %32 : f32 to vector<16x128xf32>
    %166 = arith.mulf %165, %47 : vector<16x128xf32>
    %167 = arith.addf %164, %166 : vector<16x128xf32>
    %cst_29 = arith.constant 0.000000e+00 : f32
    %168 = vector.broadcast %cst_29 : f32 to vector<16x128xf32>
    %169 = arith.maximumf %157, %168 : vector<16x128xf32>
    %cst_30 = arith.constant 0.000000e+00 : f32
    %170 = vector.broadcast %cst_30 : f32 to vector<16x128xf32>
    %171 = arith.maximumf %167, %170 : vector<16x128xf32>
    %172 = vector.broadcast %15 : f32 to vector<16x128xf32>
    %173 = arith.mulf %172, %37 : vector<16x128xf32>
    %174 = arith.mulf %173, %169 : vector<16x128xf32>
    %175 = vector.broadcast %16 : f32 to vector<16x128xf32>
    %176 = arith.mulf %175, %39 : vector<16x128xf32>
    %177 = arith.mulf %176, %171 : vector<16x128xf32>
    %178 = arith.addf %174, %177 : vector<16x128xf32>
    %179 = vector.broadcast %17 : f32 to vector<16x128xf32>
    %180 = arith.mulf %179, %41 : vector<16x128xf32>
    %181 = arith.addf %178, %180 : vector<16x128xf32>
    %182 = vector.broadcast %33 : f32 to vector<16x128xf32>
    %183 = arith.mulf %182, %43 : vector<16x128xf32>
    %184 = arith.mulf %183, %169 : vector<16x128xf32>
    %185 = vector.broadcast %34 : f32 to vector<16x128xf32>
    %186 = arith.mulf %185, %45 : vector<16x128xf32>
    %187 = arith.mulf %186, %171 : vector<16x128xf32>
    %188 = arith.addf %184, %187 : vector<16x128xf32>
    %189 = vector.broadcast %35 : f32 to vector<16x128xf32>
    %190 = arith.mulf %189, %47 : vector<16x128xf32>
    %191 = arith.addf %188, %190 : vector<16x128xf32>
    %c0_31 = arith.constant 0 : index
    %c0_32 = arith.constant 0 : index
    %c0_33 = arith.constant 0 : index
    %192 = vector.load %arg3[%c0_31, %c0_32, %c0_33] : memref<2x16x128xf32, #tpu.memory_space<vmem>>, vector<1x16x128xf32>
    %193 = vector.shape_cast %192 : vector<1x16x128xf32> to vector<16x128xf32>
    %194 = vector.shape_cast %181 : vector<16x128xf32> to vector<1x16x128xf32>
    tpu.vector_store %arg3[%c0_31, %c0_32, %c0_33], %194 {strides = array<i32>} : memref<2x16x128xf32, #tpu.memory_space<vmem>>, vector<1x16x128xf32>,
    %c1_34 = arith.constant 1 : index
    %c0_35 = arith.constant 0 : index
    %c0_36 = arith.constant 0 : index
    %195 = vector.load %arg3[%c1_34, %c0_35, %c0_36] : memref<2x16x128xf32, #tpu.memory_space<vmem>>, vector<1x16x128xf32>
    %196 = vector.shape_cast %195 : vector<1x16x128xf32> to vector<16x128xf32>
    %197 = vector.shape_cast %191 : vector<16x128xf32> to vector<1x16x128xf32>
    tpu.vector_store %arg3[%c1_34, %c0_35, %c0_36], %197 {strides = array<i32>} : memref<2x16x128xf32, #tpu.memory_space<vmem>>, vector<1x16x128xf32>,
    return
  }
  func.func @transform_0(%arg0: i32) -> i32 {
    %c0_i32 = arith.constant 0 : i32
    %c0_i32_0 = arith.constant 0 : i32
    return %c0_i32 : i32
  }
  func.func @transform_1(%arg0: i32) -> (i32, i32, i32) {
    %c0_i32 = arith.constant 0 : i32
    %c0_i32_0 = arith.constant 0 : i32
    %c0_i32_1 = arith.constant 0 : i32
    return %c0_i32, %arg0, %c0_i32_0 : i32, i32, i32
  }
  func.func @transform_2(%arg0: i32) -> (i32, i32, i32) {
    %c0_i32 = arith.constant 0 : i32
    %c0_i32_0 = arith.constant 0 : i32
    %c0_i32_1 = arith.constant 0 : i32
    return %c0_i32, %arg0, %c0_i32_0 : i32, i32, i32
  }
}

</mosaic_0001>

<llo_original>
// kernel: mlp_pregression.1
$region0: #{mlp_pregression.1}
  #allocation0 [shape = 'u32[]', space=smem, size = 0x4, offset = 0x4, fixed_abs, tag = 'smem constant byte address 0x4 - core index']
  #allocation1 [shape = 'u32[144,128]{1,0:T(1,128)}', space=vmem, size = 0x12000, scoped, tag = 'internal scratch']
  %s0 = inlined_call_operand.vmem [shape: f32[36], index: 0, kind: input, shape index: {}]
  %s1 = inlined_call_operand.vmem [shape: f32[6,16,128], index: 1, kind: input, shape index: {}]
  %s2 = inlined_call_operand.vmem [shape: f32[2,16,128], index: 2, kind: output, shape index: {}]
  %s3 = sld [smem:[#allocation0]]
  $region22: #{mlp_pregression.1} parent=0
    _
  %s5 = ssub.s32 1, %s3
  %s6 = scalar_select 0, %s5, %s3
  $region1: #{mlp_pregression.1} parent=0
    #allocation2 [shape = 'u8[512]{0}', space=smem, size = 0x200, scoped, tag = 'input window, operand 0, single buffered']
    #allocation3 [shape = 's32[1]{0}', space=sflag, size = 0x4, scoped, tag = 'scoped memory for mlp_pregression.1']
    %7 = vsyncpa [#allocation3], 0
    // Predicated region
    $region2: #{mlp_pregression.1} parent=1 // pred_check
      _
    $region3: #{mlp_pregression.1} parent=1 // pred_check_branch
      %9 = sbr.rel (0) target = $region5
    $region4: #{mlp_pregression.1} parent=1 // pred_region
      %s11 = ssub.s32 16, 16
      %12 = vsyncadd [#allocation3], %s11
      %s14 = sshll.u32 %s0, 4
      %s15 = int_to_ptr.vmem [resolvable:$true] %s14
      %17 = dma.vmem_to_smem %s15, 16, [#allocation2], [#allocation3]
    $region5: #{mlp_pregression.1} parent=1 // pred_fallthru
      _
    // Predicated region
    $region6: #{mlp_pregression.1} parent=1 // pred_check
      _
    $region7: #{mlp_pregression.1} parent=1 // pred_check_branch
      %19 = sbr.rel (0) target = $region9
    $region8: #{mlp_pregression.1} parent=1 // pred_region
      _
    $region9: #{mlp_pregression.1} parent=1 // pred_fallthru
      _
    // Predicated region
    $region10: #{mlp_pregression.1} parent=1 // pred_check
      _
    $region11: #{mlp_pregression.1} parent=1 // pred_check_branch
      %21 = sbr.rel (0) target = $region13
    $region12: #{mlp_pregression.1} parent=1 // pred_region
      %22 = dma.done [#allocation3], 16
    $region13: #{mlp_pregression.1} parent=1 // pred_fallthru
      _
    %23 = sfence
    %s24 = sld [smem:[#allocation2]]
    %s25 = sld [smem:[#allocation2 + $0x1]]
    %s26 = sld [smem:[#allocation2 + $0x2]]
    %s27 = sld [smem:[#allocation2 + $0x3]]
    %s28 = sld [smem:[#allocation2 + $0x4]]
    %s29 = sld [smem:[#allocation2 + $0x5]]
    %s30 = sld [smem:[#allocation2 + $0x6]]
    %s31 = sld [smem:[#allocation2 + $0x7]]
    %s32 = sld [smem:[#allocation2 + $0x8]]
    %s33 = sld [smem:[#allocation2 + $0x9]]
    %s34 = sld [smem:[#allocation2 + $0xa]]
    %s35 = sld [smem:[#allocation2 + $0xb]]
    %s36 = sld [smem:[#allocation2 + $0xc]]
    %s37 = sld [smem:[#allocation2 + $0xd]]
    %s38 = sld [smem:[#allocation2 + $0xe]]
    %s39 = sld [smem:[#allocation2 + $0xf]]
    %s40 = sld [smem:[#allocation2 + $0x10]]
    %s41 = sld [smem:[#allocation2 + $0x11]]
    %s42 = sld [smem:[#allocation2 + $0x12]]
    %s43 = sld [smem:[#allocation2 + $0x13]]
    %s44 = sld [smem:[#allocation2 + $0x14]]
    %s45 = sld [smem:[#allocation2 + $0x15]]
    %s46 = sld [smem:[#allocation2 + $0x16]]
    %s47 = sld [smem:[#allocation2 + $0x17]]
    %s48 = sld [smem:[#allocation2 + $0x18]]
    %s49 = sld [smem:[#allocation2 + $0x19]]
    %s50 = sld [smem:[#allocation2 + $0x1a]]
    %s51 = sld [smem:[#allocation2 + $0x1b]]
    %s52 = sld [smem:[#allocation2 + $0x1c]]
    %s53 = sld [smem:[#allocation2 + $0x1d]]
    %s54 = sld [smem:[#allocation2 + $0x1e]]
    %s55 = sld [smem:[#allocation2 + $0x1f]]
    %s56 = sld [smem:[#allocation2 + $0x20]]
    %s57 = sld [smem:[#allocation2 + $0x21]]
    %s58 = sld [smem:[#allocation2 + $0x22]]
    %s59 = sld [smem:[#allocation2 + $0x23]]
    %v60 = vld [vmem:[%s1] sm:$0xff]
    %v61 = vld [vmem:[%s1 + $0x8] sm:$0xff]
    %s62 = scalar_lea.vmem %s1, 16
    %v63 = vld [vmem:[%s62] sm:$0xff]
    %v64 = vld [vmem:[%s62 + $0x8] sm:$0xff]
    %s65 = scalar_lea.vmem %s1, 32
    %v66 = vld [vmem:[%s65] sm:$0xff]
    %v67 = vld [vmem:[%s65 + $0x8] sm:$0xff]
    %s68 = scalar_lea.vmem %s1, 48
    %v69 = vld [vmem:[%s68] sm:$0xff]
    %v70 = vld [vmem:[%s68 + $0x8] sm:$0xff]
    %s71 = scalar_lea.vmem %s1, 64
    %v72 = vld [vmem:[%s71] sm:$0xff]
    %v73 = vld [vmem:[%s71 + $0x8] sm:$0xff]
    %s74 = scalar_lea.vmem %s1, 80
    %v75 = vld [vmem:[%s74] sm:$0xff]
    %v76 = vld [vmem:[%s74 + $0x8] sm:$0xff]
    %v77 = vstv %s24
    %v78 = vmul.f32 %v77, %v60
    %v79 = vmul.f32 %v77, %v61
    %v80 = vstv %s25
    %v81 = vmul.f32 %v80, %v63
    %v82 = vmul.f32 %v80, %v64
    %v83 = vadd.f32 %v78, %v81
    %v84 = vadd.f32 %v79, %v82
    %v85 = vstv %s26
    %v86 = vmul.f32 %v85, %v66
    %v87 = vmul.f32 %v85, %v67
    %v88 = vadd.f32 %v83, %v86
    %v89 = vadd.f32 %v84, %v87
    %v90 = vmax.f32 %v88, 0.0
    %v91 = vmax.f32 %v89, 0.0
    %v92 = vmin.f32 %v90, 6.0
    %v93 = vmin.f32 %v91, 6.0
    %v94 = vstv %s42
    %v95 = vmul.f32 %v94, %v69
    %v96 = vmul.f32 %v94, %v70
    %v97 = vstv %s43
    %v98 = vmul.f32 %v97, %v72
    %v99 = vmul.f32 %v97, %v73
    %v100 = vadd.f32 %v95, %v98
    %v101 = vadd.f32 %v96, %v99
    %v102 = vstv %s44
    %v103 = vmul.f32 %v102, %v75
    %v104 = vmul.f32 %v102, %v76
    %v105 = vadd.f32 %v100, %v103
    %v106 = vadd.f32 %v101, %v104
    %v107 = vmax.f32 %v105, 0.0
    %v108 = vmax.f32 %v106, 0.0
    %v109 = vmin.f32 %v107, 6.0
    %v110 = vmin.f32 %v108, 6.0
    %v111 = vstv %s27
    %v112 = vmul.f32 %v111, %v60
    %v113 = vmul.f32 %v111, %v61
    %v114 = vmul.f32 %v112, %v92
    %v115 = vmul.f32 %v113, %v93
    %v116 = vstv %s28
    %v117 = vmul.f32 %v116, %v63
    %v118 = vmul.f32 %v116, %v64
    %v119 = vmul.f32 %v117, %v109
    %v120 = vmul.f32 %v118, %v110
    %v121 = vadd.f32 %v114, %v119
    %v122 = vadd.f32 %v115, %v120
    %v123 = vstv %s29
    %v124 = vmul.f32 %v123, %v66
    %v125 = vmul.f32 %v123, %v67
    %v126 = vadd.f32 %v121, %v124
    %v127 = vadd.f32 %v122, %v125
    %v128 = vstv %s45
    %v129 = vmul.f32 %v128, %v69
    %v130 = vmul.f32 %v128, %v70
    %v131 = vmul.f32 %v129, %v92
    %v132 = vmul.f32 %v130, %v93
    %v133 = vstv %s46
    %v134 = vmul.f32 %v133, %v72
    %v135 = vmul.f32 %v133, %v73
    %v136 = vmul.f32 %v134, %v109
    %v137 = vmul.f32 %v135, %v110
    %v138 = vadd.f32 %v131, %v136
    %v139 = vadd.f32 %v132, %v137
    %v140 = vstv %s47
    %v141 = vmul.f32 %v140, %v75
    %v142 = vmul.f32 %v140, %v76
    %v143 = vadd.f32 %v138, %v141
    %v144 = vadd.f32 %v139, %v142
    %v145 = vmax.f32 %v126, 0.0
    %v146 = vmax.f32 %v127, 0.0
    %v147 = vmin.f32 %v145, 6.0
    %v148 = vmin.f32 %v146, 6.0
    %v149 = vmax.f32 %v143, 0.0
    %v150 = vmax.f32 %v144, 0.0
    %v151 = vmin.f32 %v149, 6.0
    %v152 = vmin.f32 %v150, 6.0
    %v153 = vstv %s30
    %v154 = vmul.f32 %v153, %v60
    %v155 = vmul.f32 %v153, %v61
    %v156 = vmul.f32 %v154, %v147
    %v157 = vmul.f32 %v155, %v148
    %v158 = vstv %s31
    %v159 = vmul.f32 %v158, %v63
    %v160 = vmul.f32 %v158, %v64
    %v161 = vmul.f32 %v159, %v151
    %v162 = vmul.f32 %v160, %v152
    %v163 = vadd.f32 %v156, %v161
    %v164 = vadd.f32 %v157, %v162
    %v165 = vstv %s32
    %v166 = vmul.f32 %v165, %v66
    %v167 = vmul.f32 %v165, %v67
    %v168 = vadd.f32 %v163, %v166
    %v169 = vadd.f32 %v164, %v167
    %v170 = vstv %s48
    %v171 = vmul.f32 %v170, %v69
    %v172 = vmul.f32 %v170, %v70
    %v173 = vmul.f32 %v171, %v147
    %v174 = vmul.f32 %v172, %v148
    %v175 = vstv %s49
    %v176 = vmul.f32 %v175, %v72
    %v177 = vmul.f32 %v175, %v73
    %v178 = vmul.f32 %v176, %v151
    %v179 = vmul.f32 %v177, %v152
    %v180 = vadd.f32 %v173, %v178
    %v181 = vadd.f32 %v174, %v179
    %v182 = vstv %s50
    %v183 = vmul.f32 %v182, %v75
    %v184 = vmul.f32 %v182, %v76
    %v185 = vadd.f32 %v180, %v183
    %v186 = vadd.f32 %v181, %v184
    %v187 = vmax.f32 %v168, 0.0
    %v188 = vmax.f32 %v169, 0.0
    %v189 = vmax.f32 %v185, 0.0
    %v190 = vmax.f32 %v186, 0.0
    %v191 = vstv %s33
    %v192 = vmul.f32 %v191, %v60
    %v193 = vmul.f32 %v191, %v61
    %v194 = vmul.f32 %v192, %v187
    %v195 = vmul.f32 %v193, %v188
    %v196 = vstv %s34
    %v197 = vmul.f32 %v196, %v63
    %v198 = vmul.f32 %v196, %v64
    %v199 = vmul.f32 %v197, %v189
    %v200 = vmul.f32 %v198, %v190
    %v201 = vadd.f32 %v194, %v199
    %v202 = vadd.f32 %v195, %v200
    %v203 = vstv %s35
    %v204 = vmul.f32 %v203, %v66
    %v205 = vmul.f32 %v203, %v67
    %v206 = vadd.f32 %v201, %v204
    %v207 = vadd.f32 %v202, %v205
    %v208 = vstv %s51
    %v209 = vmul.f32 %v208, %v69
    %v210 = vmul.f32 %v208, %v70
    %v211 = vmul.f32 %v209, %v187
    %v212 = vmul.f32 %v210, %v188
    %v213 = vstv %s52
    %v214 = vmul.f32 %v213, %v72
    %v215 = vmul.f32 %v213, %v73
    %v216 = vmul.f32 %v214, %v189
    %v217 = vmul.f32 %v215, %v190
    %v218 = vadd.f32 %v211, %v216
    %v219 = vadd.f32 %v212, %v217
    %v220 = vstv %s53
    %v221 = vmul.f32 %v220, %v75
    %v222 = vmul.f32 %v220, %v76
    %v223 = vadd.f32 %v218, %v221
    %v224 = vadd.f32 %v219, %v222
    %v225 = vmax.f32 %v206, 0.0
    %v226 = vmax.f32 %v207, 0.0
    %v227 = vmax.f32 %v223, 0.0
    %v228 = vmax.f32 %v224, 0.0
    %v229 = vstv %s36
    %v230 = vmul.f32 %v229, %v60
    %v231 = vmul.f32 %v229, %v61
    %v232 = vmul.f32 %v230, %v225
    %v233 = vmul.f32 %v231, %v226
    %v234 = vstv %s37
    %v235 = vmul.f32 %v234, %v63
    %v236 = vmul.f32 %v234, %v64
    %v237 = vmul.f32 %v235, %v227
    %v238 = vmul.f32 %v236, %v228
    %v239 = vadd.f32 %v232, %v237
    %v240 = vadd.f32 %v233, %v238
    %v241 = vstv %s38
    %v242 = vmul.f32 %v241, %v66
    %v243 = vmul.f32 %v241, %v67
    %v244 = vadd.f32 %v239, %v242
    %v245 = vadd.f32 %v240, %v243
    %v246 = vstv %s54
    %v247 = vmul.f32 %v246, %v69
    %v248 = vmul.f32 %v246, %v70
    %v249 = vmul.f32 %v247, %v225
    %v250 = vmul.f32 %v248, %v226
    %v251 = vstv %s55
    %v252 = vmul.f32 %v251, %v72
    %v253 = vmul.f32 %v251, %v73
    %v254 = vmul.f32 %v252, %v227
    %v255 = vmul.f32 %v253, %v228
    %v256 = vadd.f32 %v249, %v254
    %v257 = vadd.f32 %v250, %v255
    %v258 = vstv %s56
    %v259 = vmul.f32 %v258, %v75
    %v260 = vmul.f32 %v258, %v76
    %v261 = vadd.f32 %v256, %v259
    %v262 = vadd.f32 %v257, %v260
    %v263 = vmax.f32 %v244, 0.0
    %v264 = vmax.f32 %v245, 0.0
    %v265 = vmax.f32 %v261, 0.0
    %v266 = vmax.f32 %v262, 0.0
    %v267 = vstv %s39
    %v268 = vmul.f32 %v267, %v60
    %v269 = vmul.f32 %v267, %v61
    %v270 = vmul.f32 %v268, %v263
    %v271 = vmul.f32 %v269, %v264
    %v272 = vstv %s40
    %v273 = vmul.f32 %v272, %v63
    %v274 = vmul.f32 %v272, %v64
    %v275 = vmul.f32 %v273, %v265
    %v276 = vmul.f32 %v274, %v266
    %v277 = vadd.f32 %v270, %v275
    %v278 = vadd.f32 %v271, %v276
    %v279 = vstv %s41
    %v280 = vmul.f32 %v279, %v66
    %v281 = vmul.f32 %v279, %v67
    %v282 = vadd.f32 %v277, %v280
    %v283 = vadd.f32 %v278, %v281
    %v284 = vstv %s57
    %v285 = vmul.f32 %v284, %v69
    %v286 = vmul.f32 %v284, %v70
    %v287 = vmul.f32 %v285, %v263
    %v288 = vmul.f32 %v286, %v264
    %v289 = vstv %s58
    %v290 = vmul.f32 %v289, %v72
    %v291 = vmul.f32 %v289, %v73
    %v292 = vmul.f32 %v290, %v265
    %v293 = vmul.f32 %v291, %v266
    %v294 = vadd.f32 %v287, %v292
    %v295 = vadd.f32 %v288, %v293
    %v296 = vstv %s59
    %v297 = vmul.f32 %v296, %v75
    %v298 = vmul.f32 %v296, %v76
    %v299 = vadd.f32 %v294, %v297
    %v300 = vadd.f32 %v295, %v298
    %301 = vst [vmem:[%s2] sm:$0xff] %v282
    %302 = vst [vmem:[%s2 + $0x8] sm:$0xff] %v283
    %s303 = scalar_lea.vmem %s2, 16
    %304 = vst [vmem:[%s303] sm:$0xff] %v299
    %305 = vst [vmem:[%s303 + $0x8] sm:$0xff] %v300
    // Predicated region
    $region14: #{mlp_pregression.1} parent=1 // pred_check
      _
    $region15: #{mlp_pregression.1} parent=1 // pred_check_branch
      %307 = sbr.rel (0) target = $region17
    $region16: #{mlp_pregression.1} parent=1 // pred_region
      _
    $region17: #{mlp_pregression.1} parent=1 // pred_fallthru
      _
    // Predicated region
    $region18: #{mlp_pregression.1} parent=1 // pred_check
      _
    $region19: #{mlp_pregression.1} parent=1 // pred_check_branch
      %309 = sbr.rel (0) target = $region21
    $region20: #{mlp_pregression.1} parent=1 // pred_region
      _
    $region21: #{mlp_pregression.1} parent=1 // pred_fallthru
      _
    %310 = vsyncpa [#allocation3], 1

</llo_original>
